<compile_context>
chip_gen: v7x
topology: tpu7x:2x2x1
jax: 0.10.0
libtpu: 0.0.40
codegen_flags: <defaults>
</compile_context>

<pallas_src>
import math
import jax
import jax.numpy as jnp
from jax.experimental import pallas as pl
from jax.experimental.pallas import tpu as pltpu

EPS = 1e-5
H1, H2 = 200, 300   # logical hidden widths of the PyTorch module
LANE = 128


def _round_up(x, m):
    return (x + m - 1) // m * m


def critic_kernel(state_ref, act_ref, w1_ref, w2_ref, aux1_ref, aux2_ref, b3_ref,
                  out_ref):
    # state_ref : (B, S_PAD)   bf16
    # act_ref   : (B, H1_PAD)  bf16   action lane-shifted into cols [H1 : H1+A], rest 0
    # w1_ref    : (S_PAD, H1_PAD) bf16
    # w2_ref    : (H1_PAD, H2_PAD) bf16  packed concat weight (rows 0:H1 state, H1:H1+A action)
    # aux1_ref  : (2, H1_PAD) f32   rows = [gamma1, beta1]       (padded cols are 0)
    # aux2_ref  : (3, H2_PAD) f32   rows = [gamma2, beta2, w3]   (padded cols are 0)
    # b3_ref    : (1, 1) f32
    # out_ref   : (B, 1) f32

    # ---- layer 1: Linear(state_dim, 200) + BatchNorm1d(200) (train) + ReLU ----------
    h1 = jnp.dot(state_ref[...], w1_ref[...], preferred_element_type=jnp.float32)
    mu1 = jnp.mean(h1, axis=0, keepdims=True)
    d1 = h1 - mu1
    var1 = jnp.mean(d1 * d1, axis=0, keepdims=True)          # biased var (torch BN train)
    scale1 = aux1_ref[0:1, :] * jax.lax.rsqrt(var1 + EPS)     # gamma * rsqrt(var+eps)
    shift1 = aux1_ref[1:2, :] - mu1 * scale1                  # beta - mu*scale
    h1 = jnp.maximum(h1 * scale1 + shift1, 0.0)               # padded lanes stay exactly 0

    # ---- concat([h1, action], 1): h1's padded lanes are 0, action is pre-shifted ----
    both = (h1 + act_ref[...].astype(jnp.float32)).astype(jnp.bfloat16)

    # ---- layer 2: Linear(200+A, 300) + BatchNorm1d(300) (train) + ReLU --------------
    h2 = jnp.dot(both, w2_ref[...], preferred_element_type=jnp.float32)
    mu2 = jnp.mean(h2, axis=0, keepdims=True)
    d2 = h2 - mu2
    var2 = jnp.mean(d2 * d2, axis=0, keepdims=True)
    scale2 = aux2_ref[0:1, :] * jax.lax.rsqrt(var2 + EPS)
    shift2 = aux2_ref[1:2, :] - mu2 * scale2
    h2 = jnp.maximum(h2 * scale2 + shift2, 0.0)

    # ---- final Linear(300, 1): VPU multiply + lane reduce (no N=1 MXU matmul) -------
    q = jnp.sum(h2 * aux2_ref[2:3, :], axis=-1, keepdims=True) + b3_ref[...]
    out_ref[...] = q


def critic_forward(state, action, kp):
    """state: (B, state_dim) f32, action: (B, action_dim+param_dim) f32."""
    B = state.shape[0]
    S_PAD, H1_PAD = kp["w1"].shape
    A = action.shape[1]

    # layout plumbing (lane padding / lane shift) done wrapper-side
    s_p = jnp.zeros((B, S_PAD), jnp.bfloat16).at[:, :state.shape[1]].set(
        state.astype(jnp.bfloat16))
    a_p = jnp.zeros((B, H1_PAD), jnp.bfloat16).at[:, H1:H1 + A].set(
        action.astype(jnp.bfloat16))

    vmem = pl.BlockSpec(memory_space=pltpu.MemorySpace.VMEM)
    args = (s_p, a_p, kp["w1"], kp["w2"], kp["aux1"], kp["aux2"], kp["b3"])

    # TODO(synk): for large batches, switch to a batch-tiled grid with a two-pass BN
    # (phase 1 accumulates per-feature sum/sumsq, phase 2 normalizes + layers 2/3) so
    # DMA pipelines behind the MXU and the kernel fits v7x's 64 MiB VMEM / both TCs.
    return pl.pallas_call(
        critic_kernel,
        out_shape=jax.ShapeDtypeStruct((B, 1), jnp.float32),
        in_specs=[vmem] * len(args),
        out_specs=vmem,
    )(*args)


# ----------------------------- parameters ---------------------------------------------

def init_params(key, state_dim, action_dim, param_dim):
    """Logical (unpadded, f32) parameters matching the PyTorch module's init."""
    A = action_dim + param_dim
    in2 = H1 + A
    ks = jax.random.split(key, 4)

    def xavier(k, fan_in, fan_out):
        bound = math.sqrt(6.0 / (fan_in + fan_out))
        return jax.random.uniform(k, (fan_in, fan_out), jnp.float32, -bound, bound)

    w1 = xavier(ks[0], state_dim, H1)        # Linear(state_dim, 200).weight.T, xavier
    w2 = xavier(ks[1], in2, H2)              # Linear(200+A, 300).weight.T, xavier
    w3 = jax.random.uniform(ks[2], (H2, 1), jnp.float32, -0.003, 0.003)
    b3 = jax.random.uniform(ks[3], (1, 1), jnp.float32,
                            -1.0 / math.sqrt(H2), 1.0 / math.sqrt(H2))
    # NOTE: b1/b2 omitted on purpose — train-mode BatchNorm subtracts the batch mean,
    # so the linear biases cancel exactly from the forward output.
    return dict(w1=w1, w2=w2, w3=w3, b3=b3,
                g1=jnp.ones((H1,), jnp.float32), be1=jnp.zeros((H1,), jnp.float32),
                g2=jnp.ones((H2,), jnp.float32), be2=jnp.zeros((H2,), jnp.float32),
                state_dim=state_dim, A=A)


def pack_params(p):
    """Pad/pack logical params into the lane-dense bf16/f32 kernel layout."""
    state_dim, A = p["state_dim"], p["A"]
    S_PAD = _round_up(state_dim, LANE)
    H1_PAD = _round_up(H1 + A, LANE)        # 256 for A <= 56
    H2_PAD = _round_up(H2, LANE)            # 384

    w1_p = jnp.zeros((S_PAD, H1_PAD), jnp.float32).at[:state_dim, :H1].set(p["w1"])
    w2_p = (jnp.zeros((H1_PAD, H2_PAD), jnp.float32)
            .at[:H1, :H2].set(p["w2"][:H1])          # state-feature part
            .at[H1:H1 + A, :H2].set(p["w2"][H1:]))   # action part

    aux1 = (jnp.zeros((2, H1_PAD), jnp.float32)
            .at[0, :H1].set(p["g1"]).at[1, :H1].set(p["be1"]))
    aux2 = (jnp.zeros((3, H2_PAD), jnp.float32)
            .at[0, :H2].set(p["g2"]).at[1, :H2].set(p["be2"])
            .at[2, :H2].set(p["w3"][:, 0]))

    return dict(w1=w1_p.astype(jnp.bfloat16), w2=w2_p.astype(jnp.bfloat16),
                aux1=aux1, aux2=aux2, b3=p["b3"])


# ----------------------------- references ---------------------------------------------

def critic_reference_mirror(state, action, kp):
    """Pure-JAX mirror of the kernel's exact numerics (bf16 matmuls, f32 stats)."""
    B = state.shape[0]
    S_PAD, H1_PAD = kp["w1"].shape
    A = action.shape[1]
    s = jnp.zeros((B, S_PAD), jnp.bfloat16).at[:, :state.shape[1]].set(
        state.astype(jnp.bfloat16))
    a = jnp.zeros((B, H1_PAD), jnp.bfloat16).at[:, H1:H1 + A].set(
        action.astype(jnp.bfloat16)).astype(jnp.float32)

    h1 = jnp.dot(s, kp["w1"], preferred_element_type=jnp.float32)
    mu1 = h1.mean(0, keepdims=True)
    var1 = ((h1 - mu1) ** 2).mean(0, keepdims=True)
    sc1 = kp["aux1"][0:1] * jax.lax.rsqrt(var1 + EPS)
    h1 = jnp.maximum(h1 * sc1 + (kp["aux1"][1:2] - mu1 * sc1), 0.0)

    both = (h1 + a).astype(jnp.bfloat16)
    h2 = jnp.dot(both, kp["w2"], preferred_element_type=jnp.float32)
    mu2 = h2.mean(0, keepdims=True)
    var2 = ((h2 - mu2) ** 2).mean(0, keepdims=True)
    sc2 = kp["aux2"][0:1] * jax.lax.rsqrt(var2 + EPS)
    h2 = jnp.maximum(h2 * sc2 + (kp["aux2"][1:2] - mu2 * sc2), 0.0)

    return jnp.sum(h2 * kp["aux2"][2:3], axis=-1, keepdims=True) + kp["b3"]


def critic_reference_f32(state, action, p):
    """Full-precision reference of the original module's forward (train-mode BN)."""
    h1 = state @ p["w1"]
    mu1 = h1.mean(0, keepdims=True)
    var1 = ((h1 - mu1) ** 2).mean(0, keepdims=True)
    h1 = jnp.maximum((h1 - mu1) * jax.lax.rsqrt(var1 + EPS) * p["g1"] + p["be1"], 0.0)
    both = jnp.concatenate([h1, action], axis=1)
    h2 = both @ p["w2"]
    mu2 = h2.mean(0, keepdims=True)
    var2 = ((h2 - mu2) ** 2).mean(0, keepdims=True)
    h2 = jnp.maximum((h2 - mu2) * jax.lax.rsqrt(var2 + EPS) * p["g2"] + p["be2"], 0.0)
    return h2 @ p["w3"] + p["b3"]


# ----------------------------- main ----------------------------------------------------

if __name__ == "__main__":
    B, STATE_DIM, ACTION_DIM, PARAM_DIM = 8, 16, 4, 4
    key = jax.random.PRNGKey(0)
    k_s, k_a, k_p = jax.random.split(key, 3)

    state = jax.random.normal(k_s, (B, STATE_DIM), jnp.float32)
    action = jax.random.normal(k_a, (B, ACTION_DIM + PARAM_DIM), jnp.float32)

    params = init_params(k_p, STATE_DIM, ACTION_DIM, PARAM_DIM)
    kp = pack_params(params)

    q = jax.block_until_ready(critic_forward(state, action, kp))
    assert q.shape == (B, 1)

    q_mirror = critic_reference_mirror(state, action, kp)   # same numerics -> tight
    q_f32 = critic_reference_f32(state, action, params)     # full f32 semantics -> loose (bf16)
    assert jnp.allclose(q, q_mirror, atol=1e-4, rtol=1e-3), (q, q_mirror)
    assert jnp.allclose(q, q_f32, atol=2e-2, rtol=2e-2), (q, q_f32)
    print("KERNEL_OK")
</pallas_src>

<mosaic_0001>
module attributes {stable_mosaic.version = 11 : i64} {
  func.func @critic_kernel(%arg0: memref<8x128xbf16, #tpu.memory_space<vmem>>, %arg1: memref<8x256xbf16, #tpu.memory_space<vmem>>, %arg2: memref<128x256xbf16, #tpu.memory_space<vmem>>, %arg3: memref<256x384xbf16, #tpu.memory_space<vmem>>, %arg4: memref<2x256xf32, #tpu.memory_space<vmem>>, %arg5: memref<3x384xf32, #tpu.memory_space<vmem>>, %arg6: memref<1x1xf32, #tpu.memory_space<vmem>>, %arg7: memref<8x1xf32, #tpu.memory_space<vmem>>) attributes {dimension_semantics = [], scalar_prefetch = 0 : i64, scratch_operands = 0 : i64, tpu.core_type = #tpu.core_type<tc>} {
    %c0 = arith.constant 0 : index
    %c0_0 = arith.constant 0 : index
    %0 = vector.load %arg0[%c0, %c0_0] : memref<8x128xbf16, #tpu.memory_space<vmem>>, vector<8x128xbf16>
    %c0_1 = arith.constant 0 : index
    %c0_2 = arith.constant 0 : index
    %1 = vector.load %arg2[%c0_1, %c0_2] : memref<128x256xbf16, #tpu.memory_space<vmem>>, vector<128x256xbf16>
    %cst = arith.constant dense<0.000000e+00> : vector<8x256xf32>
    %2 = tpu.matmul %0, %1, %cst {dimension_numbers = #tpu.dot_dimension_numbers<[1], [0], [0], [1], [0, 0, 1, 1], [], []>} : vector<8x128xbf16>, vector<128x256xbf16>, vector<8x256xf32> -> vector<8x256xf32>
    %cst_3 = arith.constant dense<0.000000e+00> : vector<256xf32>
    %3 = vector.multi_reduction <add>, %2, %cst_3 [0] : vector<8x256xf32> to vector<256xf32>
    %4 = vector.shape_cast %3 : vector<256xf32> to vector<1x256xf32>
    %cst_4 = arith.constant 8.000000e+00 : f32
    %5 = vector.broadcast %cst_4 : f32 to vector<1x256xf32>
    %6 = arith.divf %4, %5 : vector<1x256xf32>
    %7 = vector.broadcast %6 : vector<1x256xf32> to vector<8x256xf32>
    %8 = arith.subf %2, %7 : vector<8x256xf32>
    %9 = arith.mulf %8, %8 : vector<8x256xf32>
    %cst_5 = arith.constant dense<0.000000e+00> : vector<256xf32>
    %10 = vector.multi_reduction <add>, %9, %cst_5 [0] : vector<8x256xf32> to vector<256xf32>
    %11 = vector.shape_cast %10 : vector<256xf32> to vector<1x256xf32>
    %cst_6 = arith.constant 8.000000e+00 : f32
    %12 = vector.broadcast %cst_6 : f32 to vector<1x256xf32>
    %13 = arith.divf %11, %12 : vector<1x256xf32>
    %c0_7 = arith.constant 0 : index
    %c0_8 = arith.constant 0 : index
    %14 = vector.load %arg4[%c0_7, %c0_8] : memref<2x256xf32, #tpu.memory_space<vmem>>, vector<1x256xf32>
    %cst_9 = arith.constant 9.99999974E-6 : f32
    %15 = vector.broadcast %cst_9 : f32 to vector<1x256xf32>
    %16 = arith.addf %13, %15 : vector<1x256xf32>
    %17 = math.rsqrt %16 : vector<1x256xf32>
    %18 = arith.mulf %14, %17 : vector<1x256xf32>
    %c1 = arith.constant 1 : index
    %c0_10 = arith.constant 0 : index
    %19 = vector.load %arg4[%c1, %c0_10] : memref<2x256xf32, #tpu.memory_space<vmem>>, vector<1x256xf32>
    %20 = arith.mulf %6, %18 : vector<1x256xf32>
    %21 = arith.subf %19, %20 : vector<1x256xf32>
    %22 = vector.broadcast %18 : vector<1x256xf32> to vector<8x256xf32>
    %23 = arith.mulf %2, %22 : vector<8x256xf32>
    %24 = vector.broadcast %21 : vector<1x256xf32> to vector<8x256xf32>
    %25 = arith.addf %23, %24 : vector<8x256xf32>
    %cst_11 = arith.constant 0.000000e+00 : f32
    %26 = vector.broadcast %cst_11 : f32 to vector<8x256xf32>
    %27 = arith.maximumf %25, %26 : vector<8x256xf32>
    %c0_12 = arith.constant 0 : index
    %c0_13 = arith.constant 0 : index
    %28 = vector.load %arg1[%c0_12, %c0_13] : memref<8x256xbf16, #tpu.memory_space<vmem>>, vector<8x256xbf16>
    %29 = arith.extf %28 : vector<8x256xbf16> to vector<8x256xf32>
    %30 = arith.addf %27, %29 : vector<8x256xf32>
    %31 = arith.truncf %30 : vector<8x256xf32> to vector<8x256xbf16>
    %c0_14 = arith.constant 0 : index
    %c0_15 = arith.constant 0 : index
    %32 = vector.load %arg3[%c0_14, %c0_15] : memref<256x384xbf16, #tpu.memory_space<vmem>>, vector<256x384xbf16>
    %cst_16 = arith.constant dense<0.000000e+00> : vector<8x384xf32>
    %33 = tpu.matmul %31, %32, %cst_16 {dimension_numbers = #tpu.dot_dimension_numbers<[1], [0], [0], [1], [0, 0, 1, 1], [], []>} : vector<8x256xbf16>, vector<256x384xbf16>, vector<8x384xf32> -> vector<8x384xf32>
    %cst_17 = arith.constant dense<0.000000e+00> : vector<384xf32>
    %34 = vector.multi_reduction <add>, %33, %cst_17 [0] : vector<8x384xf32> to vector<384xf32>
    %35 = vector.shape_cast %34 : vector<384xf32> to vector<1x384xf32>
    %cst_18 = arith.constant 8.000000e+00 : f32
    %36 = vector.broadcast %cst_18 : f32 to vector<1x384xf32>
    %37 = arith.divf %35, %36 : vector<1x384xf32>
    %38 = vector.broadcast %37 : vector<1x384xf32> to vector<8x384xf32>
    %39 = arith.subf %33, %38 : vector<8x384xf32>
    %40 = arith.mulf %39, %39 : vector<8x384xf32>
    %cst_19 = arith.constant dense<0.000000e+00> : vector<384xf32>
    %41 = vector.multi_reduction <add>, %40, %cst_19 [0] : vector<8x384xf32> to vector<384xf32>
    %42 = vector.shape_cast %41 : vector<384xf32> to vector<1x384xf32>
    %cst_20 = arith.constant 8.000000e+00 : f32
    %43 = vector.broadcast %cst_20 : f32 to vector<1x384xf32>
    %44 = arith.divf %42, %43 : vector<1x384xf32>
    %c0_21 = arith.constant 0 : index
    %c0_22 = arith.constant 0 : index
    %45 = vector.load %arg5[%c0_21, %c0_22] : memref<3x384xf32, #tpu.memory_space<vmem>>, vector<1x384xf32>
    %cst_23 = arith.constant 9.99999974E-6 : f32
    %46 = vector.broadcast %cst_23 : f32 to vector<1x384xf32>
    %47 = arith.addf %44, %46 : vector<1x384xf32>
    %48 = math.rsqrt %47 : vector<1x384xf32>
    %49 = arith.mulf %45, %48 : vector<1x384xf32>
    %c1_24 = arith.constant 1 : index
    %c0_25 = arith.constant 0 : index
    %50 = vector.load %arg5[%c1_24, %c0_25] : memref<3x384xf32, #tpu.memory_space<vmem>>, vector<1x384xf32>
    %51 = arith.mulf %37, %49 : vector<1x384xf32>
    %52 = arith.subf %50, %51 : vector<1x384xf32>
    %53 = vector.broadcast %49 : vector<1x384xf32> to vector<8x384xf32>
    %54 = arith.mulf %33, %53 : vector<8x384xf32>
    %55 = vector.broadcast %52 : vector<1x384xf32> to vector<8x384xf32>
    %56 = arith.addf %54, %55 : vector<8x384xf32>
    %cst_26 = arith.constant 0.000000e+00 : f32
    %57 = vector.broadcast %cst_26 : f32 to vector<8x384xf32>
    %58 = arith.maximumf %56, %57 : vector<8x384xf32>
    %c2 = arith.constant 2 : index
    %c0_27 = arith.constant 0 : index
    %59 = vector.load %arg5[%c2, %c0_27] : memref<3x384xf32, #tpu.memory_space<vmem>>, vector<1x384xf32>
    %60 = vector.broadcast %59 : vector<1x384xf32> to vector<8x384xf32>
    %61 = arith.mulf %58, %60 : vector<8x384xf32>
    %cst_28 = arith.constant dense<0.000000e+00> : vector<8xf32>
    %62 = vector.multi_reduction <add>, %61, %cst_28 [1] : vector<8x384xf32> to vector<8xf32>
    %63 = vector.shape_cast %62 : vector<8xf32> to vector<8x1xf32>
    %c0_29 = arith.constant 0 : index
    %c0_30 = arith.constant 0 : index
    %64 = vector.load %arg6[%c0_29, %c0_30] : memref<1x1xf32, #tpu.memory_space<vmem>>, vector<1x1xf32>
    %65 = vector.broadcast %64 : vector<1x1xf32> to vector<8x1xf32>
    %66 = arith.addf %63, %65 : vector<8x1xf32>
    %c0_31 = arith.constant 0 : index
    %c0_32 = arith.constant 0 : index
    %67 = vector.load %arg7[%c0_31, %c0_32] : memref<8x1xf32, #tpu.memory_space<vmem>>, vector<8x1xf32>
    tpu.vector_store %arg7[%c0_31, %c0_32], %66 {strides = array<i32>} : memref<8x1xf32, #tpu.memory_space<vmem>>, vector<8x1xf32>,
    return
  }
}

</mosaic_0001>

<llo_original>
// kernel: tpu_custom_call.1
$region0: #{tpu_custom_call.1}
  #allocation0 [shape = 'u32[]', space=smem, size = 0x4, offset = 0x4, fixed_abs, tag = 'smem constant byte address 0x4 - core index']
  #allocation1 [shape = 'u32[144,128]{1,0:T(1,128)}', space=vmem, size = 0x12000, scoped, tag = 'internal scratch']
  #allocation2 [shape = 'f32[1,1]{1,0:T(1,128)S(1)}', space=vmem, size = 0x200, scoped, tag = 'scoped memory for tpu_custom_call.1']
  %s0 = inlined_call_operand.hbm [shape: bf16[8,128], index: 0, kind: input, shape index: {}]
  %s1 = inlined_call_operand.hbm [shape: bf16[8,256], index: 1, kind: input, shape index: {}]
  %s2 = inlined_call_operand.hbm [shape: bf16[128,256], index: 2, kind: input, shape index: {}]
  %s3 = inlined_call_operand.hbm [shape: bf16[256,384], index: 3, kind: input, shape index: {}]
  %s4 = inlined_call_operand.vmem [shape: f32[2,256], index: 4, kind: input, shape index: {}]
  %s5 = inlined_call_operand.vmem [shape: f32[3,384], index: 5, kind: input, shape index: {}]
  %s6 = inlined_call_operand.<no memory space> [shape: f32[1,1], index: 6, kind: input, shape index: {}]
  %s7 = inlined_call_operand.vmem [shape: f32[8,1], index: 7, kind: output, shape index: {}]
  %s8 = sld [smem:[#allocation0]]
  $region54: #{tpu_custom_call.1} parent=0
    _
  %s10 = ssub.s32 1, %s8
  %s11 = scalar_select 0, %s10, %s8
  %v12 = vstv %s6
  %13 = vst [vmem:[#allocation2] sm:$0x1] %v12
  $region1: #{tpu_custom_call.1} parent=0
    #allocation3 [shape = 'u8[2048]{0}', space=vmem, size = 0x800, scoped, tag = 'input window, operand 0, single buffered']
    #allocation4 [shape = 's32[1]{0}', space=sflag, size = 0x4, scoped, tag = 'scoped memory for tpu_custom_call.1']
    #allocation5 [shape = 'u8[4096]{0}', space=vmem, size = 0x1000, scoped, tag = 'input window, operand 1, single buffered']
    #allocation6 [shape = 's32[1]{0}', space=sflag, size = 0x4, scoped, tag = 'scoped memory for tpu_custom_call.1']
    #allocation7 [shape = 'u8[65536]{0}', space=vmem, size = 0x10000, scoped, tag = 'input window, operand 2, single buffered']
    #allocation8 [shape = 'u8[196608]{0}', space=vmem, size = 0x30000, scoped, tag = 'input window, operand 3, single buffered']
    #allocation9 [shape = 's32[1]{0}', space=sflag, size = 0x4, scoped, tag = 'scoped memory for tpu_custom_call.1']
    %14 = vsyncpa [#allocation4], 0
    %15 = vsyncpa [#allocation6], 0
    %16 = vsyncpa [#allocation9], 0
    // Predicated region
    $region2: #{tpu_custom_call.1} parent=1 // pred_check
      _
    $region3: #{tpu_custom_call.1} parent=1 // pred_check_branch
      %18 = sbr.rel (0) target = $region5
    $region4: #{tpu_custom_call.1} parent=1 // pred_region
      %s20 = ssub.s32 64, 64
      %21 = vsyncadd [#allocation4], %s20
      %s23 = sshll.u32 [#allocation3], 4
      %s24 = int_to_ptr.vmem [resolvable:$true] %s23
      %26 = dma.hbm_to_vmem [thread:$0]  %s0, 64, %s24, [#allocation4]
    $region5: #{tpu_custom_call.1} parent=1 // pred_fallthru
      _
    // Predicated region
    $region6: #{tpu_custom_call.1} parent=1 // pred_check
      _
    $region7: #{tpu_custom_call.1} parent=1 // pred_check_branch
      %28 = sbr.rel (0) target = $region9
    $region8: #{tpu_custom_call.1} parent=1 // pred_region
      %s30 = ssub.s32 128, 128
      %31 = vsyncadd [#allocation6], %s30
      %s33 = sshll.u32 [#allocation5], 4
      %s34 = int_to_ptr.vmem [resolvable:$true] %s33
      %36 = dma.hbm_to_vmem [thread:$0]  %s1, 128, %s34, [#allocation6]
    $region9: #{tpu_custom_call.1} parent=1 // pred_fallthru
      _
    // Predicated region
    $region10: #{tpu_custom_call.1} parent=1 // pred_check
      _
    $region11: #{tpu_custom_call.1} parent=1 // pred_check_branch
      %38 = sbr.rel (0) target = $region13
    $region12: #{tpu_custom_call.1} parent=1 // pred_region
      %s40 = ssub.s32 2048, 2048
      %41 = vsyncadd [#allocation6], %s40
      %s42 = sshll.u32 [#allocation7], 4
      %s43 = int_to_ptr.vmem [resolvable:$true] %s42
      %48 = dma.hbm_to_vmem [thread:$0]  %s2, 2048, %s43, [#allocation6], 128, 128, 8
    $region13: #{tpu_custom_call.1} parent=1 // pred_fallthru
      _
    // Predicated region
    $region14: #{tpu_custom_call.1} parent=1 // pred_check
      _
    $region15: #{tpu_custom_call.1} parent=1 // pred_check_branch
      %50 = sbr.rel (0) target = $region17
    $region16: #{tpu_custom_call.1} parent=1 // pred_region
      %s52 = ssub.s32 6144, 6144
      %53 = vsyncadd [#allocation9], %s52
      %s54 = sshll.u32 [#allocation8], 4
      %s55 = int_to_ptr.vmem [resolvable:$true] %s54
      %60 = dma.hbm_to_vmem [thread:$0]  %s3, 6144, %s55, [#allocation9], 192, 192, 12
    $region17: #{tpu_custom_call.1} parent=1 // pred_fallthru
      _
    // Predicated region
    $region18: #{tpu_custom_call.1} parent=1 // pred_check
      _
    $region19: #{tpu_custom_call.1} parent=1 // pred_check_branch
      %62 = sbr.rel (0) target = $region21
    $region20: #{tpu_custom_call.1} parent=1 // pred_region
      _
    $region21: #{tpu_custom_call.1} parent=1 // pred_fallthru
      _
    // Predicated region
    $region22: #{tpu_custom_call.1} parent=1 // pred_check
      _
    $region23: #{tpu_custom_call.1} parent=1 // pred_check_branch
      %64 = sbr.rel (0) target = $region25
    $region24: #{tpu_custom_call.1} parent=1 // pred_region
      _
    $region25: #{tpu_custom_call.1} parent=1 // pred_fallthru
      _
    // Predicated region
    $region26: #{tpu_custom_call.1} parent=1 // pred_check
      _
    $region27: #{tpu_custom_call.1} parent=1 // pred_check_branch
      %66 = sbr.rel (0) target = $region29
    $region28: #{tpu_custom_call.1} parent=1 // pred_region
      _
    $region29: #{tpu_custom_call.1} parent=1 // pred_fallthru
      _
    // Predicated region
    $region30: #{tpu_custom_call.1} parent=1 // pred_check
      _
    $region31: #{tpu_custom_call.1} parent=1 // pred_check_branch
      %68 = sbr.rel (0) target = $region33
    $region32: #{tpu_custom_call.1} parent=1 // pred_region
      %69 = dma.done [#allocation4], 64
    $region33: #{tpu_custom_call.1} parent=1 // pred_fallthru
      _
    // Predicated region
    $region34: #{tpu_custom_call.1} parent=1 // pred_check
      _
    $region35: #{tpu_custom_call.1} parent=1 // pred_check_branch
      %71 = sbr.rel (0) target = $region37
    $region36: #{tpu_custom_call.1} parent=1 // pred_region
      %72 = dma.done [#allocation6], 128
    $region37: #{tpu_custom_call.1} parent=1 // pred_fallthru
      _
    // Predicated region
    $region38: #{tpu_custom_call.1} parent=1 // pred_check
      _
    $region39: #{tpu_custom_call.1} parent=1 // pred_check_branch
      %74 = sbr.rel (0) target = $region41
    $region40: #{tpu_custom_call.1} parent=1 // pred_region
      %75 = dma.done [#allocation6], 2048
    $region41: #{tpu_custom_call.1} parent=1 // pred_fallthru
      _
    // Predicated region
    $region42: #{tpu_custom_call.1} parent=1 // pred_check
      _
    $region43: #{tpu_custom_call.1} parent=1 // pred_check_branch
      %77 = sbr.rel (0) target = $region45
    $region44: #{tpu_custom_call.1} parent=1 // pred_region
      %78 = dma.done [#allocation9], 6144
    $region45: #{tpu_custom_call.1} parent=1 // pred_fallthru
      _
    %v80 = vld [vmem:[#allocation3] sm:$0xf]
    %v81 = vld [vmem:[#allocation7] sm:$0xff]
    %v82 = vld [vmem:[#allocation7 + $0x8] sm:$0xff]
    %v83 = vld [vmem:[#allocation7 + $0x10] sm:$0xff]
    %v84 = vld [vmem:[#allocation7 + $0x18] sm:$0xff]
    %v85 = vld [vmem:[#allocation7 + $0x20] sm:$0xff]
    %v86 = vld [vmem:[#allocation7 + $0x28] sm:$0xff]
    %v87 = vld [vmem:[#allocation7 + $0x30] sm:$0xff]
    %v88 = vld [vmem:[#allocation7 + $0x38] sm:$0xff]
    %v89 = vld [vmem:[#allocation7 + $0x40] sm:$0xff]
    %v90 = vld [vmem:[#allocation7 + $0x48] sm:$0xff]
    %v91 = vld [vmem:[#allocation7 + $0x50] sm:$0xff]
    %v92 = vld [vmem:[#allocation7 + $0x58] sm:$0xff]
    %v93 = vld [vmem:[#allocation7 + $0x60] sm:$0xff]
    %v94 = vld [vmem:[#allocation7 + $0x68] sm:$0xff]
    %v95 = vld [vmem:[#allocation7 + $0x70] sm:$0xff]
    %v96 = vld [vmem:[#allocation7 + $0x78] sm:$0xff]
    %v113 = vunpack.c.l.b16 %v81
    %v114 = vunpack.c.h.b16 %v81
    %v115 = vunpack.c.l.b16 %v82
    %v116 = vunpack.c.h.b16 %v82
    %v117 = vunpack.c.l.b16 %v83
    %v118 = vunpack.c.h.b16 %v83
    %v119 = vunpack.c.l.b16 %v84
    %v120 = vunpack.c.h.b16 %v84
    %v121 = vunpack.c.l.b16 %v85
    %v122 = vunpack.c.h.b16 %v85
    %v123 = vunpack.c.l.b16 %v86
    %v124 = vunpack.c.h.b16 %v86
    %v125 = vunpack.c.l.b16 %v87
    %v126 = vunpack.c.h.b16 %v87
    %v127 = vunpack.c.l.b16 %v88
    %v128 = vunpack.c.h.b16 %v88
    %v129 = vunpack.c.l.b16 %v89
    %v130 = vunpack.c.h.b16 %v89
    %v131 = vunpack.c.l.b16 %v90
    %v132 = vunpack.c.h.b16 %v90
    %v133 = vunpack.c.l.b16 %v91
    %v134 = vunpack.c.h.b16 %v91
    %v135 = vunpack.c.l.b16 %v92
    %v136 = vunpack.c.h.b16 %v92
    %v137 = vunpack.c.l.b16 %v93
    %v138 = vunpack.c.h.b16 %v93
    %v139 = vunpack.c.l.b16 %v94
    %v140 = vunpack.c.h.b16 %v94
    %v141 = vunpack.c.l.b16 %v95
    %v142 = vunpack.c.h.b16 %v95
    %v143 = vunpack.c.l.b16 %v96
    %v144 = vunpack.c.h.b16 %v96
    %v145 = vpack.c.b16 %v115, %v113
    %v146 = vpack.c.b16 %v116, %v114
    %v147 = vpack.c.b16 %v119, %v117
    %v148 = vpack.c.b16 %v120, %v118
    %v149 = vpack.c.b16 %v123, %v121
    %v150 = vpack.c.b16 %v124, %v122
    %v151 = vpack.c.b16 %v127, %v125
    %v152 = vpack.c.b16 %v128, %v126
    %v153 = vpack.c.b16 %v131, %v129
    %v154 = vpack.c.b16 %v132, %v130
    %v155 = vpack.c.b16 %v135, %v133
    %v156 = vpack.c.b16 %v136, %v134
    %v157 = vpack.c.b16 %v139, %v137
    %v158 = vpack.c.b16 %v140, %v138
    %v159 = vpack.c.b16 %v143, %v141
    %v160 = vpack.c.b16 %v144, %v142
    %177 = vmatprep.subr.bf16.mxu0 %v146
    %178 = vmatpush1.bf16.msra.mxu0 %v145
    %179 = vmatprep.subr.bf16.mxu0 %v148
    %180 = vmatpush1.bf16.msra.mxu0 %v147
    %181 = vmatprep.subr.bf16.mxu0 %v150
    %182 = vmatpush1.bf16.msra.mxu0 %v149
    %183 = vmatprep.subr.bf16.mxu0 %v152
    %184 = vmatpush1.bf16.msra.mxu0 %v151
    %185 = vmatprep.subr.bf16.mxu0 %v154
    %186 = vmatpush1.bf16.msra.mxu0 %v153
    %187 = vmatprep.subr.bf16.mxu0 %v156
    %188 = vmatpush1.bf16.msra.mxu0 %v155
    %189 = vmatprep.subr.bf16.mxu0 %v158
    %190 = vmatpush1.bf16.msra.mxu0 %v157
    %191 = vmatprep.subr.bf16.mxu0 %v160
    %192 = vmatpush1.bf16.msra.mxu0 %v159
    %193 = vmatprep.subr.bf16.mxu0 0
    %194 = vmatpush1.bf16.msra.mxu0 0
    %195 = vmatprep.subr.bf16.mxu0 0
    %196 = vmatpush1.bf16.msra.mxu0 0
    %197 = vmatprep.subr.bf16.mxu0 0
    %198 = vmatpush1.bf16.msra.mxu0 0
    %199 = vmatprep.subr.bf16.mxu0 0
    %200 = vmatpush1.bf16.msra.mxu0 0
    %201 = vmatprep.subr.bf16.mxu0 0
    %202 = vmatpush1.bf16.msra.mxu0 0
    %203 = vmatprep.subr.bf16.mxu0 0
    %204 = vmatpush1.bf16.msra.mxu0 0
    %205 = vmatprep.subr.bf16.mxu0 0
    %206 = vmatpush1.bf16.msra.mxu0 0
    %207 = vmatprep.subr.bf16.mxu0 0
    %208 = vmatpush1.bf16.msra.mxu0 0
    %209 = vmatprep.mubr.bf16.mxu0 0
    %210 = vmatmul.mubr.bf16.gmra.mrb[0].mxu0 %v80
    %v211 = vpop.f32.mrb[0].mxu0
    %v212 = vadd.f32 0.0, %v211
    %v213 = vpop.f32.mrb[0].mxu0
    %v214 = vadd.f32 0.0, %v213
    %v215 = vpop.f32.mrb[0].mxu0
    %v216 = vpop.f32.mrb[0].mxu0
    %217 = vdwg.mxu0
    %v218 = vrot.slane %v212, 4
    %v219 = vadd.f32 %v212, %v218
    %v220 = vrot.slane %v219, 2
    %v221 = vadd.f32 %v219, %v220
    %v222 = vrot.slane %v221, 1
    %v223 = vadd.f32 %v221, %v222
    %v224 = vrot.slane %v214, 4
    %v225 = vadd.f32 %v214, %v224
    %v226 = vrot.slane %v225, 2
    %v227 = vadd.f32 %v225, %v226
    %v228 = vrot.slane %v227, 1
    %v229 = vadd.f32 %v227, %v228
    %v230 = vrcp.pop 8.0
    %v231 = vmul.f32 %v223, %v230
    %v232 = vmul.f32 %v229, %v230
    %v233 = vsub.f32 %v212, %v231
    %v234 = vsub.f32 %v214, %v232
    %v235 = vmul.f32 %v233, %v233
    %v236 = vmul.f32 %v234, %v234
    %v237 = vrot.slane %v235, 4
    %v238 = vadd.f32 %v235, %v237
    %v239 = vrot.slane %v238, 2
    %v240 = vadd.f32 %v238, %v239
    %v241 = vrot.slane %v240, 1
    %v242 = vadd.f32 %v240, %v241
    %v243 = vrot.slane %v236, 4
    %v244 = vadd.f32 %v236, %v243
    %v245 = vrot.slane %v244, 2
    %v246 = vadd.f32 %v244, %v245
    %v247 = vrot.slane %v246, 1
    %v248 = vadd.f32 %v246, %v247
    %v249 = vmul.f32 %v242, %v230
    %v250 = vmul.f32 %v248, %v230
    %v251 = vld [vmem:[%s4] ss:$2 sm:$0x3]
    %v252 = vadd.f32 %v249, 1e-05
    %v253 = vadd.f32 %v250, 1e-05
    %v254 = vrsqrt.pop %v252
    %v255 = vrsqrt.pop %v253
    %v258 = vcombine.low %v254, %v255
    %v260 = vunpack.c.l.s4 1966171168
    %v261 = vunpack.c.0.s8 %v260
    %v262 = vlaneseq
    %v263 = vshrl.u32 %v262, 7
    %v264 = vsub.s32 %v261, %v263
    %v265 = vrot.slane %v258, %v264
    %v267 = vunpack.c.l.s4 1966171168
    %v268 = vunpack.c.0.s8 %v267
    %v269 = vlaneseq
    %v270 = vshrl.u32 %v269, 7
    %v271 = vsub.s32 %v268, %v270
    %v272 = vrot.slane %v265, %v271
    %v274 = vmul.f32 %v251, %v272
    %s275 = scalar_lea.vmem %s4, 1
    %v276 = vld [vmem:[%s275] ss:$2 sm:$0x3]
    %v278 = vlaneseq
    %v279 = vshrl.u32 %v278, 7
    %v280 = vsub.s32 0, %v279
    %v281 = vrot.slane %v274, %v280
    %v282 = vlaneseq
    %v283 = vshrl.u32 %v282, 7
    %v284 = vsub.s32 1, %v283
    %v285 = vrot.slane %v274, %v284
    %v288 = vmul.f32 %v231, %v281
    %v289 = vmul.f32 %v232, %v285
    %v292 = vcombine.low %v288, %v289
    %v294 = vunpack.c.l.s4 1966171168
    %v295 = vunpack.c.0.s8 %v294
    %v296 = vlaneseq
    %v297 = vshrl.u32 %v296, 7
    %v298 = vsub.s32 %v295, %v297
    %v299 = vrot.slane %v292, %v298
    %v301 = vunpack.c.l.s4 1966171168
    %v302 = vunpack.c.0.s8 %v301
    %v303 = vlaneseq
    %v304 = vshrl.u32 %v303, 7
    %v305 = vsub.s32 %v302, %v304
    %v306 = vrot.slane %v299, %v305
    %v308 = vsub.f32 %v276, %v306
    %v309 = vmul.f32 %v212, %v281
    %v310 = vmul.f32 %v214, %v285
    %v312 = vlaneseq
    %v313 = vshrl.u32 %v312, 7
    %v314 = vsub.s32 0, %v313
    %v315 = vrot.slane %v308, %v314
    %v316 = vlaneseq
    %v317 = vshrl.u32 %v316, 7
    %v318 = vsub.s32 1, %v317
    %v319 = vrot.slane %v308, %v318
    %v322 = vadd.f32 %v309, %v315
    %v323 = vadd.f32 %v310, %v319
    %v324 = vmax.f32 %v322, 0.0
    %v325 = vmax.f32 %v323, 0.0
    %v326 = vld [vmem:[#allocation5] sm:$0xff]
    %v327 = vunpack.c.l.bf16 %v326
    %v328 = vunpack.c.h.bf16 %v326
    %v329 = vadd.f32 %v324, %v327
    %v330 = vadd.f32 %v325, %v328
    %v331 = vpack.c.bf16 %v329, %v329
    %v332 = vpack.c.bf16 %v330, %v330
    %v333 = vld [vmem:[#allocation8] sm:$0xff]
    %v334 = vld [vmem:[#allocation8 + $0x8] sm:$0xf]
    %v335 = vld [vmem:[#allocation8 + $0xc] sm:$0xff]
    %v336 = vld [vmem:[#allocation8 + $0x14] sm:$0xf]
    %v337 = vld [vmem:[#allocation8 + $0x18] sm:$0xff]
    %v338 = vld [vmem:[#allocation8 + $0x20] sm:$0xf]
    %v339 = vld [vmem:[#allocation8 + $0x24] sm:$0xff]
    %v340 = vld [vmem:[#allocation8 + $0x2c] sm:$0xf]
    %v341 = vld [vmem:[#allocation8 + $0x30] sm:$0xff]
    %v342 = vld [vmem:[#allocation8 + $0x38] sm:$0xf]
    %v343 = vld [vmem:[#allocation8 + $0x3c] sm:$0xff]
    %v344 = vld [vmem:[#allocation8 + $0x44] sm:$0xf]
    %v345 = vld [vmem:[#allocation8 + $0x48] sm:$0xff]
    %v346 = vld [vmem:[#allocation8 + $0x50] sm:$0xf]
    %v347 = vld [vmem:[#allocation8 + $0x54] sm:$0xff]
    %v348 = vld [vmem:[#allocation8 + $0x5c] sm:$0xf]
    %v349 = vld [vmem:[#allocation8 + $0x60] sm:$0xff]
    %v350 = vld [vmem:[#allocation8 + $0x68] sm:$0xf]
    %v351 = vld [vmem:[#allocation8 + $0x6c] sm:$0xff]
    %v352 = vld [vmem:[#allocation8 + $0x74] sm:$0xf]
    %v353 = vld [vmem:[#allocation8 + $0x78] sm:$0xff]
    %v354 = vld [vmem:[#allocation8 + $0x80] sm:$0xf]
    %v355 = vld [vmem:[#allocation8 + $0x84] sm:$0xff]
    %v356 = vld [vmem:[#allocation8 + $0x8c] sm:$0xf]
    %v357 = vld [vmem:[#allocation8 + $0x90] sm:$0xff]
    %v358 = vld [vmem:[#allocation8 + $0x98] sm:$0xf]
    %v359 = vld [vmem:[#allocation8 + $0x9c] sm:$0xff]
    %v360 = vld [vmem:[#allocation8 + $0xa4] sm:$0xf]
    %v361 = vld [vmem:[#allocation8 + $0xa8] sm:$0xff]
    %v362 = vld [vmem:[#allocation8 + $0xb0] sm:$0xf]
    %v363 = vld [vmem:[#allocation8 + $0xb4] sm:$0xff]
    %v364 = vld [vmem:[#allocation8 + $0xbc] sm:$0xf]
    %v365 = vld [vmem:[#allocation8 + $0xc0] sm:$0xff]
    %v366 = vld [vmem:[#allocation8 + $0xc8] sm:$0xf]
    %v367 = vld [vmem:[#allocation8 + $0xcc] sm:$0xff]
    %v368 = vld [vmem:[#allocation8 + $0xd4] sm:$0xf]
    %v369 = vld [vmem:[#allocation8 + $0xd8] sm:$0xff]
    %v370 = vld [vmem:[#allocation8 + $0xe0] sm:$0xf]
    %v371 = vld [vmem:[#allocation8 + $0xe4] sm:$0xff]
    %v372 = vld [vmem:[#allocation8 + $0xec] sm:$0xf]
    %v373 = vld [vmem:[#allocation8 + $0xf0] sm:$0xff]
    %v374 = vld [vmem:[#allocation8 + $0xf8] sm:$0xf]
    %v375 = vld [vmem:[#allocation8 + $0xfc] sm:$0xff]
    %v376 = vld [vmem:[#allocation8 + $0x104] sm:$0xf]
    %v377 = vld [vmem:[#allocation8 + $0x108] sm:$0xff]
    %v378 = vld [vmem:[#allocation8 + $0x110] sm:$0xf]
    %v379 = vld [vmem:[#allocation8 + $0x114] sm:$0xff]
    %v380 = vld [vmem:[#allocation8 + $0x11c] sm:$0xf]
    %v381 = vld [vmem:[#allocation8 + $0x120] sm:$0xff]
    %v382 = vld [vmem:[#allocation8 + $0x128] sm:$0xf]
    %v383 = vld [vmem:[#allocation8 + $0x12c] sm:$0xff]
    %v384 = vld [vmem:[#allocation8 + $0x134] sm:$0xf]
    %v385 = vld [vmem:[#allocation8 + $0x138] sm:$0xff]
    %v386 = vld [vmem:[#allocation8 + $0x140] sm:$0xf]
    %v387 = vld [vmem:[#allocation8 + $0x144] sm:$0xff]
    %v388 = vld [vmem:[#allocation8 + $0x14c] sm:$0xf]
    %v389 = vld [vmem:[#allocation8 + $0x150] sm:$0xff]
    %v390 = vld [vmem:[#allocation8 + $0x158] sm:$0xf]
    %v391 = vld [vmem:[#allocation8 + $0x15c] sm:$0xff]
    %v392 = vld [vmem:[#allocation8 + $0x164] sm:$0xf]
    %v393 = vld [vmem:[#allocation8 + $0x168] sm:$0xff]
    %v394 = vld [vmem:[#allocation8 + $0x170] sm:$0xf]
    %v395 = vld [vmem:[#allocation8 + $0x174] sm:$0xff]
    %v396 = vld [vmem:[#allocation8 + $0x17c] sm:$0xf]
    %v461 = vunpack.c.l.b16 %v333
    %v462 = vunpack.c.h.b16 %v333
    %v463 = vunpack.c.l.b16 %v334
    %v464 = vunpack.c.l.b16 %v335
    %v465 = vunpack.c.h.b16 %v335
    %v466 = vunpack.c.l.b16 %v336
    %v467 = vunpack.c.l.b16 %v337
    %v468 = vunpack.c.h.b16 %v337
    %v469 = vunpack.c.l.b16 %v338
    %v470 = vunpack.c.l.b16 %v339
    %v471 = vunpack.c.h.b16 %v339
    %v472 = vunpack.c.l.b16 %v340
    %v473 = vunpack.c.l.b16 %v341
    %v474 = vunpack.c.h.b16 %v341
    %v475 = vunpack.c.l.b16 %v342
    %v476 = vunpack.c.l.b16 %v343
    %v477 = vunpack.c.h.b16 %v343
    %v478 = vunpack.c.l.b16 %v344
    %v479 = vunpack.c.l.b16 %v345
    %v480 = vunpack.c.h.b16 %v345
    %v481 = vunpack.c.l.b16 %v346
    %v482 = vunpack.c.l.b16 %v347
    %v483 = vunpack.c.h.b16 %v347
    %v484 = vunpack.c.l.b16 %v348
    %v485 = vunpack.c.l.b16 %v349
    %v486 = vunpack.c.h.b16 %v349
    %v487 = vunpack.c.l.b16 %v350
    %v488 = vunpack.c.l.b16 %v351
    %v489 = vunpack.c.h.b16 %v351
    %v490 = vunpack.c.l.b16 %v352
    %v491 = vunpack.c.l.b16 %v353
    %v492 = vunpack.c.h.b16 %v353
    %v493 = vunpack.c.l.b16 %v354
    %v494 = vunpack.c.l.b16 %v355
    %v495 = vunpack.c.h.b16 %v355
    %v496 = vunpack.c.l.b16 %v356
    %v497 = vunpack.c.l.b16 %v357
    %v498 = vunpack.c.h.b16 %v357
    %v499 = vunpack.c.l.b16 %v358
    %v500 = vunpack.c.l.b16 %v359
    %v501 = vunpack.c.h.b16 %v359
    %v502 = vunpack.c.l.b16 %v360
    %v503 = vunpack.c.l.b16 %v361
    %v504 = vunpack.c.h.b16 %v361
    %v505 = vunpack.c.l.b16 %v362
    %v506 = vunpack.c.l.b16 %v363
    %v507 = vunpack.c.h.b16 %v363
    %v508 = vunpack.c.l.b16 %v364
    %v509 = vunpack.c.l.b16 %v365
    %v510 = vunpack.c.h.b16 %v365
    %v511 = vunpack.c.l.b16 %v366
    %v512 = vunpack.c.l.b16 %v367
    %v513 = vunpack.c.h.b16 %v367
    %v514 = vunpack.c.l.b16 %v368
    %v515 = vunpack.c.l.b16 %v369
    %v516 = vunpack.c.h.b16 %v369
    %v517 = vunpack.c.l.b16 %v370
    %v518 = vunpack.c.l.b16 %v371
    %v519 = vunpack.c.h.b16 %v371
    %v520 = vunpack.c.l.b16 %v372
    %v521 = vunpack.c.l.b16 %v373
    %v522 = vunpack.c.h.b16 %v373
    %v523 = vunpack.c.l.b16 %v374
    %v524 = vunpack.c.l.b16 %v375
    %v525 = vunpack.c.h.b16 %v375
    %v526 = vunpack.c.l.b16 %v376
    %v527 = vunpack.c.l.b16 %v377
    %v528 = vunpack.c.h.b16 %v377
    %v529 = vunpack.c.l.b16 %v378
    %v530 = vunpack.c.l.b16 %v379
    %v531 = vunpack.c.h.b16 %v379
    %v532 = vunpack.c.l.b16 %v380
    %v533 = vunpack.c.l.b16 %v381
    %v534 = vunpack.c.h.b16 %v381
    %v535 = vunpack.c.l.b16 %v382
    %v536 = vunpack.c.l.b16 %v383
    %v537 = vunpack.c.h.b16 %v383
    %v538 = vunpack.c.l.b16 %v384
    %v539 = vunpack.c.l.b16 %v385
    %v540 = vunpack.c.h.b16 %v385
    %v541 = vunpack.c.l.b16 %v386
    %v542 = vunpack.c.l.b16 %v387
    %v543 = vunpack.c.h.b16 %v387
    %v544 = vunpack.c.l.b16 %v388
    %v545 = vunpack.c.l.b16 %v389
    %v546 = vunpack.c.h.b16 %v389
    %v547 = vunpack.c.l.b16 %v390
    %v548 = vunpack.c.l.b16 %v391
    %v549 = vunpack.c.h.b16 %v391
    %v550 = vunpack.c.l.b16 %v392
    %v551 = vunpack.c.l.b16 %v393
    %v552 = vunpack.c.h.b16 %v393
    %v553 = vunpack.c.l.b16 %v394
    %v554 = vunpack.c.l.b16 %v395
    %v555 = vunpack.c.h.b16 %v395
    %v556 = vunpack.c.l.b16 %v396
    %v557 = vpack.c.b16 %v464, %v461
    %v558 = vpack.c.b16 %v465, %v462
    %v559 = vpack.c.b16 %v466, %v463
    %v560 = vpack.c.b16 %v470, %v467
    %v561 = vpack.c.b16 %v471, %v468
    %v562 = vpack.c.b16 %v472, %v469
    %v563 = vpack.c.b16 %v476, %v473
    %v564 = vpack.c.b16 %v477, %v474
    %v565 = vpack.c.b16 %v478, %v475
    %v566 = vpack.c.b16 %v482, %v479
    %v567 = vpack.c.b16 %v483, %v480
    %v568 = vpack.c.b16 %v484, %v481
    %v569 = vpack.c.b16 %v488, %v485
    %v570 = vpack.c.b16 %v489, %v486
    %v571 = vpack.c.b16 %v490, %v487
    %v572 = vpack.c.b16 %v494, %v491
    %v573 = vpack.c.b16 %v495, %v492
    %v574 = vpack.c.b16 %v496, %v493
    %v575 = vpack.c.b16 %v500, %v497
    %v576 = vpack.c.b16 %v501, %v498
    %v577 = vpack.c.b16 %v502, %v499
    %v578 = vpack.c.b16 %v506, %v503
    %v579 = vpack.c.b16 %v507, %v504
    %v580 = vpack.c.b16 %v508, %v505
    %v581 = vpack.c.b16 %v512, %v509
    %v582 = vpack.c.b16 %v513, %v510
    %v583 = vpack.c.b16 %v514, %v511
    %v584 = vpack.c.b16 %v518, %v515
    %v585 = vpack.c.b16 %v519, %v516
    %v586 = vpack.c.b16 %v520, %v517
    %v587 = vpack.c.b16 %v524, %v521
    %v588 = vpack.c.b16 %v525, %v522
    %v589 = vpack.c.b16 %v526, %v523
    %v590 = vpack.c.b16 %v530, %v527
    %v591 = vpack.c.b16 %v531, %v528
    %v592 = vpack.c.b16 %v532, %v529
    %v593 = vpack.c.b16 %v536, %v533
    %v594 = vpack.c.b16 %v537, %v534
    %v595 = vpack.c.b16 %v538, %v535
    %v596 = vpack.c.b16 %v542, %v539
    %v597 = vpack.c.b16 %v543, %v540
    %v598 = vpack.c.b16 %v544, %v541
    %v599 = vpack.c.b16 %v548, %v545
    %v600 = vpack.c.b16 %v549, %v546
    %v601 = vpack.c.b16 %v550, %v547
    %v602 = vpack.c.b16 %v554, %v551
    %v603 = vpack.c.b16 %v555, %v552
    %v604 = vpack.c.b16 %v556, %v553
    %653 = vmatprep.subr.bf16.mxu0 %v558
    %654 = vmatpush1.bf16.msra.mxu0 %v557
    %655 = vmatprep.subr.bf16.mxu0 %v561
    %656 = vmatpush1.bf16.msra.mxu0 %v560
    %657 = vmatprep.subr.bf16.mxu0 %v564
    %658 = vmatpush1.bf16.msra.mxu0 %v563
    %659 = vmatprep.subr.bf16.mxu0 %v567
    %660 = vmatpush1.bf16.msra.mxu0 %v566
    %661 = vmatprep.subr.bf16.mxu0 %v570
    %662 = vmatpush1.bf16.msra.mxu0 %v569
    %663 = vmatprep.subr.bf16.mxu0 %v573
    %664 = vmatpush1.bf16.msra.mxu0 %v572
    %665 = vmatprep.subr.bf16.mxu0 %v576
    %666 = vmatpush1.bf16.msra.mxu0 %v575
    %667 = vmatprep.subr.bf16.mxu0 %v579
    %668 = vmatpush1.bf16.msra.mxu0 %v578
    %669 = vmatprep.subr.bf16.mxu0 %v582
    %670 = vmatpush1.bf16.msra.mxu0 %v581
    %671 = vmatprep.subr.bf16.mxu0 %v585
    %672 = vmatpush1.bf16.msra.mxu0 %v584
    %673 = vmatprep.subr.bf16.mxu0 %v588
    %674 = vmatpush1.bf16.msra.mxu0 %v587
    %675 = vmatprep.subr.bf16.mxu0 %v591
    %676 = vmatpush1.bf16.msra.mxu0 %v590
    %677 = vmatprep.subr.bf16.mxu0 %v594
    %678 = vmatpush1.bf16.msra.mxu0 %v593
    %679 = vmatprep.subr.bf16.mxu0 %v597
    %680 = vmatpush1.bf16.msra.mxu0 %v596
    %681 = vmatprep.subr.bf16.mxu0 %v600
    %682 = vmatpush1.bf16.msra.mxu0 %v599
    %683 = vmatprep.subr.bf16.mxu0 %v603
    %684 = vmatpush1.bf16.msra.mxu0 %v602
    %685 = vmatprep.mubr.bf16.mxu0 %v332
    %686 = vmatmul.mubr.bf16.gmra.mrb[0].mxu0 %v331
    %v687 = vpop.f32.mrb[0].mxu0
    %v688 = vadd.f32 0.0, %v687
    %v689 = vpop.f32.mrb[0].mxu0
    %v690 = vadd.f32 0.0, %v689
    %v691 = vpop.f32.mrb[0].mxu0
    %v692 = vpop.f32.mrb[0].mxu0
    %693 = vdwg.mxu0
    %694 = vmatprep.subr.bf16.mxu0 0
    %695 = vmatpush1.bf16.msra.mxu0 %v559
    %696 = vmatprep.subr.bf16.mxu0 0
    %697 = vmatpush1.bf16.msra.mxu0 %v562
    %698 = vmatprep.subr.bf16.mxu0 0
    %699 = vmatpush1.bf16.msra.mxu0 %v565
    %700 = vmatprep.subr.bf16.mxu0 0
    %701 = vmatpush1.bf16.msra.mxu0 %v568
    %702 = vmatprep.subr.bf16.mxu0 0
    %703 = vmatpush1.bf16.msra.mxu0 %v571
    %704 = vmatprep.subr.bf16.mxu0 0
    %705 = vmatpush1.bf16.msra.mxu0 %v574
    %706 = vmatprep.subr.bf16.mxu0 0
    %707 = vmatpush1.bf16.msra.mxu0 %v577
    %708 = vmatprep.subr.bf16.mxu0 0
    %709 = vmatpush1.bf16.msra.mxu0 %v580
    %710 = vmatprep.subr.bf16.mxu0 0
    %711 = vmatpush1.bf16.msra.mxu0 %v583
    %712 = vmatprep.subr.bf16.mxu0 0
    %713 = vmatpush1.bf16.msra.mxu0 %v586
    %714 = vmatprep.subr.bf16.mxu0 0
    %715 = vmatpush1.bf16.msra.mxu0 %v589
    %716 = vmatprep.subr.bf16.mxu0 0
    %717 = vmatpush1.bf16.msra.mxu0 %v592
    %718 = vmatprep.subr.bf16.mxu0 0
    %719 = vmatpush1.bf16.msra.mxu0 %v595
    %720 = vmatprep.subr.bf16.mxu0 0
    %721 = vmatpush1.bf16.msra.mxu0 %v598
    %722 = vmatprep.subr.bf16.mxu0 0
    %723 = vmatpush1.bf16.msra.mxu0 %v601
    %724 = vmatprep.subr.bf16.mxu0 0
    %725 = vmatpush1.bf16.msra.mxu0 %v604
    %726 = vmatprep.mubr.bf16.mxu0 %v332
    %727 = vmatmul.mubr.bf16.gmra.mrb[0].mxu0 %v331
    %v728 = vpop.f32.mrb[0].mxu0
    %v729 = vadd.f32 0.0, %v728
    %v730 = vpop.f32.mrb[0].mxu0
    %v731 = vpop.f32.mrb[0].mxu0
    %v732 = vpop.f32.mrb[0].mxu0
    %733 = vdwg.mxu0
    %v734 = vrot.slane %v688, 4
    %v735 = vadd.f32 %v688, %v734
    %v736 = vrot.slane %v735, 2
    %v737 = vadd.f32 %v735, %v736
    %v738 = vrot.slane %v737, 1
    %v739 = vadd.f32 %v737, %v738
    %v740 = vrot.slane %v690, 4
    %v741 = vadd.f32 %v690, %v740
    %v742 = vrot.slane %v741, 2
    %v743 = vadd.f32 %v741, %v742
    %v744 = vrot.slane %v743, 1
    %v745 = vadd.f32 %v743, %v744
    %v746 = vrot.slane %v729, 4
    %v747 = vadd.f32 %v729, %v746
    %v748 = vrot.slane %v747, 2
    %v749 = vadd.f32 %v747, %v748
    %v750 = vrot.slane %v749, 1
    %v751 = vadd.f32 %v749, %v750
    %v752 = vmul.f32 %v739, %v230
    %v753 = vmul.f32 %v745, %v230
    %v754 = vmul.f32 %v751, %v230
    %v755 = vsub.f32 %v688, %v752
    %v756 = vsub.f32 %v690, %v753
    %v757 = vsub.f32 %v729, %v754
    %v758 = vmul.f32 %v755, %v755
    %v759 = vmul.f32 %v756, %v756
    %v760 = vmul.f32 %v757, %v757
    %v761 = vrot.slane %v758, 4
    %v762 = vadd.f32 %v758, %v761
    %v763 = vrot.slane %v762, 2
    %v764 = vadd.f32 %v762, %v763
    %v765 = vrot.slane %v764, 1
    %v766 = vadd.f32 %v764, %v765
    %v767 = vrot.slane %v759, 4
    %v768 = vadd.f32 %v759, %v767
    %v769 = vrot.slane %v768, 2
    %v770 = vadd.f32 %v768, %v769
    %v771 = vrot.slane %v770, 1
    %v772 = vadd.f32 %v770, %v771
    %v773 = vrot.slane %v760, 4
    %v774 = vadd.f32 %v760, %v773
    %v775 = vrot.slane %v774, 2
    %v776 = vadd.f32 %v774, %v775
    %v777 = vrot.slane %v776, 1
    %v778 = vadd.f32 %v776, %v777
    %v779 = vmul.f32 %v766, %v230
    %v780 = vmul.f32 %v772, %v230
    %v781 = vmul.f32 %v778, %v230
    %v782 = vld [vmem:[%s5] ss:$4 sm:$0x7]
    %v783 = vadd.f32 %v779, 1e-05
    %v784 = vadd.f32 %v780, 1e-05
    %v785 = vadd.f32 %v781, 1e-05
    %v786 = vrsqrt.pop %v783
    %v787 = vrsqrt.pop %v784
    %v788 = vrsqrt.pop %v785
    %v792 = vcombine.low %v786, %v787
    %v794 = vunpack.c.l.s4 1966171168
    %v795 = vunpack.c.0.s8 %v794
    %v796 = vlaneseq
    %v797 = vshrl.u32 %v796, 7
    %v798 = vsub.s32 %v795, %v797
    %v799 = vrot.slane %v792, %v798
    %v801 = vunpack.c.l.s4 1966171168
    %v802 = vunpack.c.0.s8 %v801
    %v803 = vlaneseq
    %v804 = vshrl.u32 %v803, 7
    %v805 = vsub.s32 %v802, %v804
    %v806 = vrot.slane %v788, %v805
    %v807 = vcombine.low %v799, %v806
    %v809 = vunpack.c.l.s4 1966171168
    %v810 = vunpack.c.0.s8 %v809
    %v811 = vlaneseq
    %v812 = vshrl.u32 %v811, 7
    %v813 = vsub.s32 %v810, %v812
    %v814 = vrot.slane %v807, %v813
    %v816 = vmul.f32 %v782, %v814
    %s817 = scalar_lea.vmem %s5, 1
    %v818 = vld [vmem:[%s817] ss:$4 sm:$0x7]
    %v820 = vlaneseq
    %v821 = vshrl.u32 %v820, 7
    %v822 = vsub.s32 0, %v821
    %v823 = vrot.slane %v816, %v822
    %v824 = vlaneseq
    %v825 = vshrl.u32 %v824, 7
    %v826 = vsub.s32 1, %v825
    %v827 = vrot.slane %v816, %v826
    %v828 = vlaneseq
    %v829 = vshrl.u32 %v828, 7
    %v830 = vsub.s32 2, %v829
    %v831 = vrot.slane %v816, %v830
    %v835 = vmul.f32 %v752, %v823
    %v836 = vmul.f32 %v753, %v827
    %v837 = vmul.f32 %v754, %v831
    %v841 = vcombine.low %v835, %v836
    %v843 = vunpack.c.l.s4 1966171168
    %v844 = vunpack.c.0.s8 %v843
    %v845 = vlaneseq
    %v846 = vshrl.u32 %v845, 7
    %v847 = vsub.s32 %v844, %v846
    %v848 = vrot.slane %v841, %v847
    %v850 = vunpack.c.l.s4 1966171168
    %v851 = vunpack.c.0.s8 %v850
    %v852 = vlaneseq
    %v853 = vshrl.u32 %v852, 7
    %v854 = vsub.s32 %v851, %v853
    %v855 = vrot.slane %v837, %v854
    %v856 = vcombine.low %v848, %v855
    %v858 = vunpack.c.l.s4 1966171168
    %v859 = vunpack.c.0.s8 %v858
    %v860 = vlaneseq
    %v861 = vshrl.u32 %v860, 7
    %v862 = vsub.s32 %v859, %v861
    %v863 = vrot.slane %v856, %v862
    %v865 = vsub.f32 %v818, %v863
    %v866 = vmul.f32 %v688, %v823
    %v867 = vmul.f32 %v690, %v827
    %v868 = vmul.f32 %v729, %v831
    %v870 = vlaneseq
    %v871 = vshrl.u32 %v870, 7
    %v872 = vsub.s32 0, %v871
    %v873 = vrot.slane %v865, %v872
    %v874 = vlaneseq
    %v875 = vshrl.u32 %v874, 7
    %v876 = vsub.s32 1, %v875
    %v877 = vrot.slane %v865, %v876
    %v878 = vlaneseq
    %v879 = vshrl.u32 %v878, 7
    %v880 = vsub.s32 2, %v879
    %v881 = vrot.slane %v865, %v880
    %v885 = vadd.f32 %v866, %v873
    %v886 = vadd.f32 %v867, %v877
    %v887 = vadd.f32 %v868, %v881
    %v888 = vmax.f32 %v885, 0.0
    %v889 = vmax.f32 %v886, 0.0
    %v890 = vmax.f32 %v887, 0.0
    %s891 = scalar_lea.vmem %s5, 2
    %v892 = vld [vmem:[%s891] ss:$4 sm:$0x7]
    %v894 = vlaneseq
    %v895 = vshrl.u32 %v894, 7
    %v896 = vsub.s32 0, %v895
    %v897 = vrot.slane %v892, %v896
    %v898 = vlaneseq
    %v899 = vshrl.u32 %v898, 7
    %v900 = vsub.s32 1, %v899
    %v901 = vrot.slane %v892, %v900
    %v902 = vlaneseq
    %v903 = vshrl.u32 %v902, 7
    %v904 = vsub.s32 2, %v903
    %v905 = vrot.slane %v892, %v904
    %v909 = vmul.f32 %v888, %v897
    %v910 = vmul.f32 %v889, %v901
    %v911 = vmul.f32 %v890, %v905
    %v912 = vadd.f32 %v909, %v910
    %v913 = vadd.f32 %v912, %v911
    %914 = vadd.xlane.f32.xlu0 %v913
    %v915 = vpop.xlane.xlu0 %914
    %v916 = vld [vmem:[#allocation2] sm:$0x1]
    %v918 = vlaneseq
    %v919 = vshrl.u32 %v918, 7
    %v920 = vsub.s32 0, %v919
    %v921 = vrot.slane %v916, %v920
    %v923 = vadd.f32 %v915, %v921
    %vm924 = vcmask 7168
    %925 = vst.msk [vmem:[%s7] sm:$0xff] %vm924, %v923
    // Predicated region
    $region46: #{tpu_custom_call.1} parent=1 // pred_check
      _
    $region47: #{tpu_custom_call.1} parent=1 // pred_check_branch
      %927 = sbr.rel (0) target = $region49
    $region48: #{tpu_custom_call.1} parent=1 // pred_region
      _
    $region49: #{tpu_custom_call.1} parent=1 // pred_fallthru
      _
    // Predicated region
    $region50: #{tpu_custom_call.1} parent=1 // pred_check
      _
    $region51: #{tpu_custom_call.1} parent=1 // pred_check_branch
      %929 = sbr.rel (0) target = $region53
    $region52: #{tpu_custom_call.1} parent=1 // pred_region
      _
    $region53: #{tpu_custom_call.1} parent=1 // pred_fallthru
      _
    %930 = vsyncpa [#allocation4], 1
    %931 = vsyncpa [#allocation6], 1
    %932 = vsyncpa [#allocation9], 1

</llo_original>
